<compile_context>
chip_gen: v6e
topology: v6e:2x2x1
jax: 0.10.0
libtpu: 0.0.40
codegen_flags: <defaults>
</compile_context>

<pallas_src>
import functools

import jax
import jax.numpy as jnp
from jax.experimental import pallas as pl
from jax.experimental.pallas import tpu as pltpu


# ----------------------------------------------------------------------------
# Fused kernel: masked 1x1 conv + abs PE + masked attention pooling (per batch)
# ----------------------------------------------------------------------------
def make_text_identity_kernel(n_heads, head_dim):
    scale = float(head_dim) ** -0.5

    def kernel(x_ref, m_ref, we_ref, bpe_ref, wqkv_ref, bqkv_ref,
               wp_ref, bp_ref, o_ref):
        Ce = we_ref.shape[0]
        T = x_ref.shape[-1]
        H, D = n_heads, head_dim

        x = x_ref[0]                                             # (Ci, T)
        m = m_ref[0]                                             # (1, T) float {0,1}

        # MaskedConv1D (1x1) + bias + scaled abs PE, folded into one mask multiply.
        y = (jnp.dot(we_ref[...], x, preferred_element_type=jnp.float32)
             + bpe_ref[...]) * m                                 # (Ce, T)

        # Masked mean -> pooled query token (guard fully-masked rows).
        denom = jnp.maximum(jnp.sum(m, axis=-1, keepdims=True), 1.0)   # (1, 1)
        x_pool = jnp.sum(y, axis=-1, keepdims=True) / denom            # (Ce, 1); y already masked

        # q/k/v with stacked weights: two MXU pushes (pool token, sequence).
        wqkv = wqkv_ref[...]                                     # (3Ce, Ce)
        bqkv = bqkv_ref[...]                                     # (3Ce, 1)
        qkv_pool = jnp.dot(wqkv, x_pool,
                           preferred_element_type=jnp.float32) + bqkv      # (3Ce, 1)
        q_pool = qkv_pool[:Ce]                                   # (Ce, 1)
        k_pool = qkv_pool[Ce:2 * Ce]                             # (Ce, 1)
        v_pool = qkv_pool[2 * Ce:]                               # (Ce, 1)
        kv_seq = jnp.dot(wqkv[Ce:], y,
                         preferred_element_type=jnp.float32) + bqkv[Ce:]   # (2Ce, T)
        k_seq = kv_seq[:Ce]                                      # (Ce, T)
        v_seq = kv_seq[Ce:]                                      # (Ce, T)

        # Head-vectorized masked softmax over [pool, tokens] (pool handled as one
        # extra scalar per head; no lane-axis concatenation anywhere).
        logit_pool = jnp.sum((q_pool * k_pool).reshape(H, D, 1),
                             axis=1, keepdims=True) * scale      # (H, 1, 1)
        logits = jnp.sum((q_pool * k_seq).reshape(H, D, T),
                         axis=1, keepdims=True) * scale          # (H, 1, T)
        valid = (m > 0.0)[None]                                  # (1, 1, T)
        logits = jnp.where(valid, logits, -1e30)
        m_all = jnp.maximum(logit_pool,
                            jnp.max(logits, axis=-1, keepdims=True))       # (H, 1, 1)
        p_pool = jnp.exp(logit_pool - m_all)                     # (H, 1, 1)
        p_seq = jnp.exp(logits - m_all)                          # (H, 1, T); masked -> 0
        den = p_pool + jnp.sum(p_seq, axis=-1, keepdims=True)    # (H, 1, 1)
        inv = pl.reciprocal(den, approx=True)                    # EUP rcp (own VLIW slot)
        inv = inv * (2.0 - den * inv)                            # one Newton step -> f32 accuracy

        attended = (v_pool.reshape(H, D, 1) * p_pool
                    + jnp.sum(v_seq.reshape(H, D, T) * p_seq,
                              axis=-1, keepdims=True)) * inv     # (H, D, 1)
        pooled = jnp.dot(wp_ref[...], attended.reshape(Ce, 1),
                         preferred_element_type=jnp.float32) + bp_ref[...]  # (Ce, 1)

        # Two stores: pooled token at t=0, y at t=1..T (no full-tensor concat/copy).
        o_ref[0, :, pl.ds(0, 1)] = pooled.astype(o_ref.dtype)
        o_ref[0, :, pl.ds(1, T)] = y.astype(o_ref.dtype)

    return kernel


# ----------------------------------------------------------------------------
# Wrapper: parameter plumbing + pallas_call setup
# ----------------------------------------------------------------------------
def sinusoid_encoding(seq_len, n_freqs):
    """pe of shape (2 * n_freqs, seq_len): [sin; cos]."""
    tics = jnp.arange(seq_len, dtype=jnp.float32)
    freqs = 10000.0 ** (jnp.arange(n_freqs, dtype=jnp.float32) / n_freqs)
    angles = tics[None, :] / freqs[:, None]                      # (n_freqs, T)
    return jnp.concatenate([jnp.sin(angles), jnp.cos(angles)], axis=0)


def init_params(key, in_dim, embd_dim):
    ks = jax.random.split(key, 5)

    def w(k, out_c, in_c):
        return jax.random.normal(k, (out_c, in_c), jnp.float32) / jnp.sqrt(in_c)

    zeros = lambda c: jnp.zeros((c, 1), jnp.float32)              # bias init = 0
    return dict(
        w_embd=w(ks[0], embd_dim, in_dim), b_embd=zeros(embd_dim),
        wq=w(ks[1], embd_dim, embd_dim), bq=zeros(embd_dim),
        wk=w(ks[2], embd_dim, embd_dim), bk=zeros(embd_dim),
        wv=w(ks[3], embd_dim, embd_dim), bv=zeros(embd_dim),
        wp=w(ks[4], embd_dim, embd_dim), bp=zeros(embd_dim),
    )


@functools.partial(jax.jit, static_argnames=("n_heads",))
def text_identity_forward(x, mask_bool, params, pe_scaled, n_heads):
    B, Ci, T = x.shape
    Ce = params["w_embd"].shape[0]

    m = mask_bool.astype(jnp.float32)[:, None, :]                 # (B, 1, T)
    bias_pe = params["b_embd"] + pe_scaled[:, :T]                 # fold conv bias + abs PE
    w_qkv = jnp.concatenate([params["wq"], params["wk"], params["wv"]], axis=0)  # (3Ce, Ce)
    b_qkv = jnp.concatenate([params["bq"], params["bk"], params["bv"]], axis=0)  # (3Ce, 1)

    kernel = make_text_identity_kernel(n_heads, Ce // n_heads)
    const2d = lambda b: (0, 0)   # grid-invariant blocks: fetched once, stay resident

    out_x = pl.pallas_call(
        kernel,
        out_shape=jax.ShapeDtypeStruct((B, Ce, T + 1), jnp.float32),
        grid=(B,),
        in_specs=[
            pl.BlockSpec((1, Ci, T), lambda b: (b, 0, 0)),        # x
            pl.BlockSpec((1, 1, T), lambda b: (b, 0, 0)),         # mask (float)
            pl.BlockSpec((Ce, Ci), const2d),                      # W_embd
            pl.BlockSpec((Ce, T), const2d),                       # b_embd + pe
            pl.BlockSpec((3 * Ce, Ce), const2d),                  # [Wq; Wk; Wv]
            pl.BlockSpec((3 * Ce, 1), const2d),                   # [bq; bk; bv]
            pl.BlockSpec((Ce, Ce), const2d),                      # W_proj
            pl.BlockSpec((Ce, 1), const2d),                       # b_proj
        ],
        out_specs=pl.BlockSpec((1, Ce, T + 1), lambda b: (b, 0, 0)),
        compiler_params=pltpu.CompilerParams(dimension_semantics=("parallel",)),
    )(x, m, params["w_embd"], bias_pe, w_qkv, b_qkv, params["wp"], params["bp"])

    # Output mask is just the input mask with an always-valid background token prepended.
    mask_out = jnp.pad(mask_bool, ((0, 0), (1, 0)), constant_values=True)
    return out_x, mask_out


# ----------------------------------------------------------------------------
# Pure-JAX reference (for self-check)
# ----------------------------------------------------------------------------
def reference_forward(x, mask_bool, params, pe_scaled, n_heads):
    B, Ci, T = x.shape
    Ce = params["w_embd"].shape[0]
    m = mask_bool.astype(jnp.float32)[:, None, :]
    y = jnp.einsum("oc,bct->bot", params["w_embd"], x) + params["b_embd"][None]
    y = y * m
    y = y + pe_scaled[None, :, :T] * m
    denom = jnp.maximum(jnp.sum(m, axis=-1, keepdims=True), 1.0)
    x_pool = jnp.sum(y * m, axis=-1, keepdims=True) / denom
    xc = jnp.concatenate([x_pool, y], axis=-1)
    mc = jnp.concatenate([jnp.ones_like(m[..., :1]), m], axis=-1)
    q = jnp.einsum("oc,bcs->bos", params["wq"], x_pool) + params["bq"][None]
    k = jnp.einsum("oc,bcs->bos", params["wk"], xc) + params["bk"][None]
    v = jnp.einsum("oc,bcs->bos", params["wv"], xc) + params["bv"][None]
    S, D = T + 1, Ce // n_heads
    qh = q.reshape(B, n_heads, D, 1)
    kh = k.reshape(B, n_heads, D, S)
    vh = v.reshape(B, n_heads, D, S)
    logits = jnp.einsum("bhdq,bhds->bhqs", qh, kh) * (D ** -0.5)
    logits = jnp.where(mc[:, None] > 0, logits, -jnp.inf)
    p = jax.nn.softmax(logits, axis=-1)
    pooled = jnp.einsum("bhqs,bhds->bhdq", p, vh).reshape(B, Ce, 1)
    pooled = jnp.einsum("oc,bcq->boq", params["wp"], pooled) + params["bp"][None]
    out_x = jnp.concatenate([pooled, y], axis=-1)
    return out_x, (mc[:, 0, :] > 0.5)


if __name__ == "__main__":
    B, IN_DIM, EMBD_DIM, T, MAX_SEQ_LEN, N_HEADS = 2, 32, 32, 8, 16, 4

    key = jax.random.PRNGKey(0)
    k_param, k_x = jax.random.split(key)
    params = init_params(k_param, IN_DIM, EMBD_DIM)

    # abs. positional encoding buffer (use_abs_pe=True)
    pe_scaled = sinusoid_encoding(MAX_SEQ_LEN, EMBD_DIM // 2) / (EMBD_DIM ** 0.5)

    x = jax.random.normal(k_x, (B, IN_DIM, T), jnp.float32)
    lengths = jnp.array([T, 5], dtype=jnp.int32)
    mask = jnp.arange(T)[None, :] < lengths[:, None]              # (B, T) bool

    out_x, out_mask = text_identity_forward(x, mask, params, pe_scaled, N_HEADS)
    out_x = jax.block_until_ready(out_x)
    out_mask = jax.block_until_ready(out_mask)

    ref_x, ref_mask = reference_forward(x, mask, params, pe_scaled, N_HEADS)
    assert out_x.shape == (B, EMBD_DIM, T + 1) and out_mask.shape == (B, T + 1)
    assert jnp.allclose(out_x, ref_x, atol=1e-4, rtol=1e-4)
    assert jnp.array_equal(out_mask, ref_mask)

    print("KERNEL_OK")
</pallas_src>

<mosaic_0001>
module attributes {stable_mosaic.version = 11 : i64} {
  func.func @kernel(%arg0: i32, %arg1: memref<1x32x8xf32, #tpu.memory_space<vmem>>, %arg2: memref<1x1x8xf32, #tpu.memory_space<vmem>>, %arg3: memref<32x32xf32, #tpu.memory_space<vmem>>, %arg4: memref<32x8xf32, #tpu.memory_space<vmem>>, %arg5: memref<96x32xf32, #tpu.memory_space<vmem>>, %arg6: memref<96x1xf32, #tpu.memory_space<vmem>>, %arg7: memref<32x32xf32, #tpu.memory_space<vmem>>, %arg8: memref<32x1xf32, #tpu.memory_space<vmem>>, %arg9: memref<1x32x9xf32, #tpu.memory_space<vmem>>) attributes {dimension_semantics = [#tpu.dimension_semantics<parallel>], iteration_bounds = array<i64: 2>, scalar_prefetch = 0 : i64, scratch_operands = 0 : i64, tpu.core_type = #tpu.core_type<tc>, window_params = [{transform_indices = @transform_0, window_bounds = array<i64: 1, 32, 8>}, {transform_indices = @transform_1, window_bounds = array<i64: 1, 1, 8>}, {pipeline_mode = #tpu.pipeline_mode<synchronous>, transform_indices = @transform_2, window_bounds = array<i64: 32, 32>}, {pipeline_mode = #tpu.pipeline_mode<synchronous>, transform_indices = @transform_3, window_bounds = array<i64: 32, 8>}, {pipeline_mode = #tpu.pipeline_mode<synchronous>, transform_indices = @transform_4, window_bounds = array<i64: 96, 32>}, {pipeline_mode = #tpu.pipeline_mode<synchronous>, transform_indices = @transform_5, window_bounds = array<i64: 96, 1>}, {pipeline_mode = #tpu.pipeline_mode<synchronous>, transform_indices = @transform_6, window_bounds = array<i64: 32, 32>}, {pipeline_mode = #tpu.pipeline_mode<synchronous>, transform_indices = @transform_7, window_bounds = array<i64: 32, 1>}, {transform_indices = @transform_8, window_bounds = array<i64: 1, 32, 9>}]} {
    %c0 = arith.constant 0 : index
    %c0_0 = arith.constant 0 : index
    %c0_1 = arith.constant 0 : index
    %0 = vector.load %arg1[%c0, %c0_0, %c0_1] : memref<1x32x8xf32, #tpu.memory_space<vmem>>, vector<1x32x8xf32>
    %1 = vector.shape_cast %0 : vector<1x32x8xf32> to vector<32x8xf32>
    %c0_2 = arith.constant 0 : index
    %c0_3 = arith.constant 0 : index
    %c0_4 = arith.constant 0 : index
    %2 = vector.load %arg2[%c0_2, %c0_3, %c0_4] : memref<1x1x8xf32, #tpu.memory_space<vmem>>, vector<1x1x8xf32>
    %3 = vector.shape_cast %2 : vector<1x1x8xf32> to vector<1x8xf32>
    %c0_5 = arith.constant 0 : index
    %c0_6 = arith.constant 0 : index
    %4 = vector.load %arg3[%c0_5, %c0_6] : memref<32x32xf32, #tpu.memory_space<vmem>>, vector<32x32xf32>
    %cst = arith.constant dense<0.000000e+00> : vector<32x8xf32>
    %5 = tpu.matmul %4, %1, %cst {dimension_numbers = #tpu.dot_dimension_numbers<[1], [0], [0], [1], [0, 0, 1, 1], [], []>} : vector<32x32xf32>, vector<32x8xf32>, vector<32x8xf32> -> vector<32x8xf32>
    %c0_7 = arith.constant 0 : index
    %c0_8 = arith.constant 0 : index
    %6 = vector.load %arg4[%c0_7, %c0_8] : memref<32x8xf32, #tpu.memory_space<vmem>>, vector<32x8xf32>
    %7 = arith.addf %5, %6 : vector<32x8xf32>
    %8 = vector.broadcast %3 : vector<1x8xf32> to vector<32x8xf32>
    %9 = arith.mulf %7, %8 : vector<32x8xf32>
    %cst_9 = arith.constant dense<0.000000e+00> : vector<1xf32>
    %10 = vector.multi_reduction <add>, %3, %cst_9 [1] : vector<1x8xf32> to vector<1xf32>
    %11 = vector.shape_cast %10 : vector<1xf32> to vector<1x1xf32>
    %cst_10 = arith.constant 1.000000e+00 : f32
    %12 = vector.broadcast %cst_10 : f32 to vector<1x1xf32>
    %13 = arith.maximumf %11, %12 : vector<1x1xf32>
    %cst_11 = arith.constant dense<0.000000e+00> : vector<32xf32>
    %14 = vector.multi_reduction <add>, %9, %cst_11 [1] : vector<32x8xf32> to vector<32xf32>
    %15 = vector.shape_cast %14 : vector<32xf32> to vector<32x1xf32>
    %16 = vector.broadcast %13 : vector<1x1xf32> to vector<32x1xf32>
    %17 = arith.divf %15, %16 : vector<32x1xf32>
    %c0_12 = arith.constant 0 : index
    %c0_13 = arith.constant 0 : index
    %18 = vector.load %arg5[%c0_12, %c0_13] : memref<96x32xf32, #tpu.memory_space<vmem>>, vector<96x32xf32>
    %c0_14 = arith.constant 0 : index
    %c0_15 = arith.constant 0 : index
    %19 = vector.load %arg6[%c0_14, %c0_15] : memref<96x1xf32, #tpu.memory_space<vmem>>, vector<96x1xf32>
    %cst_16 = arith.constant dense<0.000000e+00> : vector<96x1xf32>
    %20 = tpu.matmul %18, %17, %cst_16 {dimension_numbers = #tpu.dot_dimension_numbers<[1], [0], [0], [1], [0, 0, 1, 1], [], []>} : vector<96x32xf32>, vector<32x1xf32>, vector<96x1xf32> -> vector<96x1xf32>
    %21 = arith.addf %20, %19 : vector<96x1xf32>
    %22 = vector.extract_strided_slice %21 {offsets = [0, 0], sizes = [32, 1], strides = [1, 1]} : vector<96x1xf32> to vector<32x1xf32>
    %23 = vector.extract_strided_slice %21 {offsets = [32, 0], sizes = [32, 1], strides = [1, 1]} : vector<96x1xf32> to vector<32x1xf32>
    %24 = vector.extract_strided_slice %21 {offsets = [64, 0], sizes = [32, 1], strides = [1, 1]} : vector<96x1xf32> to vector<32x1xf32>
    %25 = vector.extract_strided_slice %18 {offsets = [32, 0], sizes = [64, 32], strides = [1, 1]} : vector<96x32xf32> to vector<64x32xf32>
    %cst_17 = arith.constant dense<0.000000e+00> : vector<64x8xf32>
    %26 = tpu.matmul %25, %9, %cst_17 {dimension_numbers = #tpu.dot_dimension_numbers<[1], [0], [0], [1], [0, 0, 1, 1], [], []>} : vector<64x32xf32>, vector<32x8xf32>, vector<64x8xf32> -> vector<64x8xf32>
    %27 = vector.extract_strided_slice %19 {offsets = [32, 0], sizes = [64, 1], strides = [1, 1]} : vector<96x1xf32> to vector<64x1xf32>
    %28 = vector.broadcast %27 : vector<64x1xf32> to vector<64x8xf32>
    %29 = arith.addf %26, %28 : vector<64x8xf32>
    %30 = vector.extract_strided_slice %29 {offsets = [0, 0], sizes = [32, 8], strides = [1, 1]} : vector<64x8xf32> to vector<32x8xf32>
    %31 = vector.extract_strided_slice %29 {offsets = [32, 0], sizes = [32, 8], strides = [1, 1]} : vector<64x8xf32> to vector<32x8xf32>
    %32 = arith.mulf %22, %23 : vector<32x1xf32>
    %33 = vector.shape_cast %32 : vector<32x1xf32> to vector<4x8x1xf32>
    %cst_18 = arith.constant dense<0.000000e+00> : vector<4x1xf32>
    %34 = vector.multi_reduction <add>, %33, %cst_18 [1] : vector<4x8x1xf32> to vector<4x1xf32>
    %35 = vector.shape_cast %34 : vector<4x1xf32> to vector<4x1x1xf32>
    %cst_19 = arith.constant 0.353553385 : f32
    %36 = vector.broadcast %cst_19 : f32 to vector<4x1x1xf32>
    %37 = arith.mulf %35, %36 : vector<4x1x1xf32>
    %38 = vector.broadcast %22 : vector<32x1xf32> to vector<32x8xf32>
    %39 = arith.mulf %38, %30 : vector<32x8xf32>
    %40 = vector.shape_cast %39 : vector<32x8xf32> to vector<4x8x8xf32>
    %cst_20 = arith.constant dense<0.000000e+00> : vector<4x8xf32>
    %41 = vector.multi_reduction <add>, %40, %cst_20 [1] : vector<4x8x8xf32> to vector<4x8xf32>
    %42 = vector.shape_cast %41 : vector<4x8xf32> to vector<4x1x8xf32>
    %cst_21 = arith.constant 0.353553385 : f32
    %43 = vector.broadcast %cst_21 : f32 to vector<4x1x8xf32>
    %44 = arith.mulf %42, %43 : vector<4x1x8xf32>
    %cst_22 = arith.constant 0.000000e+00 : f32
    %45 = vector.broadcast %cst_22 : f32 to vector<1x8xf32>
    %46 = arith.cmpf ogt, %3, %45 : vector<1x8xf32>
    %47 = vector.shape_cast %46 : vector<1x8xi1> to vector<1x1x8xi1>
    %cst_23 = arith.constant -1.000000e+30 : f32
    %48 = vector.shape_cast %47 : vector<1x1x8xi1> to vector<1x1x8xi1>
    %49 = vector.broadcast %48 : vector<1x1x8xi1> to vector<4x1x8xi1>
    %50 = vector.broadcast %cst_23 : f32 to vector<4x1x8xf32>
    %51 = arith.select %49, %44, %50 : vector<4x1x8xi1>, vector<4x1x8xf32>
    %cst_24 = arith.constant dense<0xFF800000> : vector<4x1xf32>
    %52 = vector.multi_reduction <maximumf>, %51, %cst_24 [2] : vector<4x1x8xf32> to vector<4x1xf32>
    %53 = vector.shape_cast %52 : vector<4x1xf32> to vector<4x1x1xf32>
    %54 = arith.maximumf %37, %53 : vector<4x1x1xf32>
    %55 = arith.subf %37, %54 : vector<4x1x1xf32>
    %56 = math.exp %55 : vector<4x1x1xf32>
    %57 = vector.broadcast %54 : vector<4x1x1xf32> to vector<4x1x8xf32>
    %58 = arith.subf %51, %57 : vector<4x1x8xf32>
    %59 = math.exp %58 : vector<4x1x8xf32>
    %cst_25 = arith.constant dense<0.000000e+00> : vector<4x1xf32>
    %60 = vector.multi_reduction <add>, %59, %cst_25 [2] : vector<4x1x8xf32> to vector<4x1xf32>
    %61 = vector.shape_cast %60 : vector<4x1xf32> to vector<4x1x1xf32>
    %62 = arith.addf %56, %61 : vector<4x1x1xf32>
    %63 = tpu.reciprocal %62 {approx = true} : vector<4x1x1xf32> -> vector<4x1x1xf32>
    %64 = arith.mulf %62, %63 : vector<4x1x1xf32>
    %cst_26 = arith.constant 2.000000e+00 : f32
    %65 = vector.broadcast %cst_26 : f32 to vector<4x1x1xf32>
    %66 = arith.subf %65, %64 : vector<4x1x1xf32>
    %67 = arith.mulf %63, %66 : vector<4x1x1xf32>
    %68 = vector.shape_cast %24 : vector<32x1xf32> to vector<4x8x1xf32>
    %69 = vector.broadcast %56 : vector<4x1x1xf32> to vector<4x8x1xf32>
    %70 = arith.mulf %68, %69 : vector<4x8x1xf32>
    %71 = vector.shape_cast %31 : vector<32x8xf32> to vector<4x8x8xf32>
    %72 = vector.broadcast %59 : vector<4x1x8xf32> to vector<4x8x8xf32>
    %73 = arith.mulf %71, %72 : vector<4x8x8xf32>
    %cst_27 = arith.constant dense<0.000000e+00> : vector<4x8xf32>
    %74 = vector.multi_reduction <add>, %73, %cst_27 [2] : vector<4x8x8xf32> to vector<4x8xf32>
    %75 = vector.shape_cast %74 : vector<4x8xf32> to vector<4x8x1xf32>
    %76 = arith.addf %70, %75 : vector<4x8x1xf32>
    %77 = vector.broadcast %67 : vector<4x1x1xf32> to vector<4x8x1xf32>
    %78 = arith.mulf %76, %77 : vector<4x8x1xf32>
    %c0_28 = arith.constant 0 : index
    %c0_29 = arith.constant 0 : index
    %79 = vector.load %arg7[%c0_28, %c0_29] : memref<32x32xf32, #tpu.memory_space<vmem>>, vector<32x32xf32>
    %80 = vector.shape_cast %78 : vector<4x8x1xf32> to vector<32x1xf32>
    %cst_30 = arith.constant dense<0.000000e+00> : vector<32x1xf32>
    %81 = tpu.matmul %79, %80, %cst_30 {dimension_numbers = #tpu.dot_dimension_numbers<[1], [0], [0], [1], [0, 0, 1, 1], [], []>} : vector<32x32xf32>, vector<32x1xf32>, vector<32x1xf32> -> vector<32x1xf32>
    %c0_31 = arith.constant 0 : index
    %c0_32 = arith.constant 0 : index
    %82 = vector.load %arg8[%c0_31, %c0_32] : memref<32x1xf32, #tpu.memory_space<vmem>>, vector<32x1xf32>
    %83 = arith.addf %81, %82 : vector<32x1xf32>
    %c0_33 = arith.constant 0 : index
    %c0_34 = arith.constant 0 : index
    %c0_35 = arith.constant 0 : index
    %84 = vector.load %arg9[%c0_33, %c0_34, %c0_35] : memref<1x32x9xf32, #tpu.memory_space<vmem>>, vector<1x32x1xf32>
    %85 = vector.shape_cast %84 : vector<1x32x1xf32> to vector<32x1xf32>
    %86 = vector.shape_cast %83 : vector<32x1xf32> to vector<1x32x1xf32>
    tpu.vector_store %arg9[%c0_33, %c0_34, %c0_35], %86 {strides = array<i32>} : memref<1x32x9xf32, #tpu.memory_space<vmem>>, vector<1x32x1xf32>,
    %c0_36 = arith.constant 0 : index
    %c0_37 = arith.constant 0 : index
    %c1 = arith.constant 1 : index
    %87 = vector.load %arg9[%c0_36, %c0_37, %c1] : memref<1x32x9xf32, #tpu.memory_space<vmem>>, vector<1x32x8xf32>
    %88 = vector.shape_cast %87 : vector<1x32x8xf32> to vector<32x8xf32>
    %89 = vector.shape_cast %9 : vector<32x8xf32> to vector<1x32x8xf32>
    tpu.vector_store %arg9[%c0_36, %c0_37, %c1], %89 {strides = array<i32>} : memref<1x32x9xf32, #tpu.memory_space<vmem>>, vector<1x32x8xf32>,
    return
  }
  func.func @transform_0(%arg0: i32) -> (i32, i32, i32) {
    %c0_i32 = arith.constant 0 : i32
    %c0_i32_0 = arith.constant 0 : i32
    %c0_i32_1 = arith.constant 0 : i32
    return %arg0, %c0_i32, %c0_i32_0 : i32, i32, i32
  }
  func.func @transform_1(%arg0: i32) -> (i32, i32, i32) {
    %c0_i32 = arith.constant 0 : i32
    %c0_i32_0 = arith.constant 0 : i32
    %c0_i32_1 = arith.constant 0 : i32
    return %arg0, %c0_i32, %c0_i32_0 : i32, i32, i32
  }
  func.func @transform_2(%arg0: i32) -> (i32, i32) {
    %c0_i32 = arith.constant 0 : i32
    %c0_i32_0 = arith.constant 0 : i32
    %c0_i32_1 = arith.constant 0 : i32
    return %c0_i32, %c0_i32_0 : i32, i32
  }
  func.func @transform_3(%arg0: i32) -> (i32, i32) {
    %c0_i32 = arith.constant 0 : i32
    %c0_i32_0 = arith.constant 0 : i32
    %c0_i32_1 = arith.constant 0 : i32
    return %c0_i32, %c0_i32_0 : i32, i32
  }
  func.func @transform_4(%arg0: i32) -> (i32, i32) {
    %c0_i32 = arith.constant 0 : i32
    %c0_i32_0 = arith.constant 0 : i32
    %c0_i32_1 = arith.constant 0 : i32
    return %c0_i32, %c0_i32_0 : i32, i32
  }
  func.func @transform_5(%arg0: i32) -> (i32, i32) {
    %c0_i32 = arith.constant 0 : i32
    %c0_i32_0 = arith.constant 0 : i32
    %c0_i32_1 = arith.constant 0 : i32
    return %c0_i32, %c0_i32_0 : i32, i32
  }
  func.func @transform_6(%arg0: i32) -> (i32, i32) {
    %c0_i32 = arith.constant 0 : i32
    %c0_i32_0 = arith.constant 0 : i32
    %c0_i32_1 = arith.constant 0 : i32
    return %c0_i32, %c0_i32_0 : i32, i32
  }
  func.func @transform_7(%arg0: i32) -> (i32, i32) {
    %c0_i32 = arith.constant 0 : i32
    %c0_i32_0 = arith.constant 0 : i32
    %c0_i32_1 = arith.constant 0 : i32
    return %c0_i32, %c0_i32_0 : i32, i32
  }
  func.func @transform_8(%arg0: i32) -> (i32, i32, i32) {
    %c0_i32 = arith.constant 0 : i32
    %c0_i32_0 = arith.constant 0 : i32
    %c0_i32_1 = arith.constant 0 : i32
    return %arg0, %c0_i32, %c0_i32_0 : i32, i32, i32
  }
}

</mosaic_0001>

<llo_original>
// kernel: text_identity_forward.1
$region0: #{text_identity_forward.1}
  #allocation0 [shape = 'u32[]', space=smem, size = 0x4, offset = 0x4, fixed_abs, tag = 'smem constant byte address 0x4 - core index']
  #allocation1 [shape = 'u32[144,128]{1,0:T(1,128)}', space=vmem, size = 0x12000, scoped, tag = 'internal scratch']
  %s0 = inlined_call_operand.vmem [shape: f32[2,32,8], index: 0, kind: input, shape index: {}]
  %s1 = inlined_call_operand.vmem [shape: f32[2,1,8], index: 1, kind: input, shape index: {}]
  %s2 = inlined_call_operand.vmem [shape: f32[32,32], index: 2, kind: input, shape index: {}]
  %s3 = inlined_call_operand.vmem [shape: f32[32,8], index: 3, kind: input, shape index: {}]
  %s4 = inlined_call_operand.vmem [shape: f32[96,32], index: 4, kind: input, shape index: {}]
  %s5 = inlined_call_operand.vmem [shape: f32[96,1], index: 5, kind: input, shape index: {}]
  %s6 = inlined_call_operand.vmem [shape: f32[32,32], index: 6, kind: input, shape index: {}]
  %s7 = inlined_call_operand.vmem [shape: f32[32,1], index: 7, kind: input, shape index: {}]
  %s8 = inlined_call_operand.vmem [shape: f32[2,32,9], index: 8, kind: output, shape index: {}]
  %s9 = sld [smem:[#allocation0]]
  $region65: #{text_identity_forward.1} parent=0
    _
  %s11 = ssub.s32 1, %s9
  %s12 = scalar_select 0, %s11, %s9
  loop: start=0, step=1, limit=4
  $region2: #{text_identity_forward.1} parent=0 // loop_pre_header
    _
  $region3: #{text_identity_forward.1} parent=0 // loop_header
    %s14 = sphi 0, %s18
    %p15 = scmp.ge.s32.totalorder %s14, 4
    %s24 = sphi 0, %s26
    %s27 = sphi 0, %s24
    %s28 = sphi 0, %s27
    %s44 = sphi 0, %s28
    %s50 = sphi 0, %s52
    %s53 = sphi 0, %s50
    %s54 = sphi 0, %s53
    %s70 = sphi 0, %s54
    %s74 = sphi 0, %s74
    %s76 = sphi 0, %s74
    %s77 = sphi 0, %s76
    %s91 = sphi 0, %s77
    %s95 = sphi 0, %s95
    %s97 = sphi 0, %s95
    %s98 = sphi 0, %s97
    %s112 = sphi 0, %s98
    %s116 = sphi 0, %s116
    %s118 = sphi 0, %s116
    %s119 = sphi 0, %s118
    %s133 = sphi 0, %s119
    %s137 = sphi 0, %s137
    %s139 = sphi 0, %s137
    %s140 = sphi 0, %s139
    %s154 = sphi 0, %s140
    %s158 = sphi 0, %s158
    %s160 = sphi 0, %s158
    %s161 = sphi 0, %s160
    %s175 = sphi 0, %s161
    %s179 = sphi 0, %s179
    %s181 = sphi 0, %s179
    %s182 = sphi 0, %s181
    %s196 = sphi 0, %s182
    %s202 = sphi 0, %s204
    %s205 = sphi 0, %s202
    %s206 = sphi 0, %s205
    %s222 = sphi 0, %s206
  $region4: #{text_identity_forward.1} parent=0 // loop_header_branch
    %17 = sbr.rel (%p15) target = $region8
  $region5: #{text_identity_forward.1} parent=0 // loop_body
    %s19 = ssub.s32 %s14, 1
    %s20 = ssub.s32 %s14, 2
    %s21 = sadd.s32 %s14, 1
    %s22 = ssub.s32 %s14, %s21
    %p23 = scmp.eq.s32.totalorder %s22, 0
    %s25 = sadd.s32 %s24, 1
    %s26 = scalar_select %p23, %s24, %s25
    %p29 = pneg %p23
    %p30 = scmp.eq.s32.totalorder %s14, 1
    %p31 = por %p29, %p30
    %p32 = scmp.ne.s32.totalorder %s24, %s27
    %p33 = scmp.eq.s32.totalorder %s14, 0
    %p34 = por %p32, %p33
    %p35 = scmp.ne.s32.totalorder %s24, %s27
    %p36 = scmp.eq.s32.totalorder %s19, 1
    %p37 = por %p35, %p36
    %p38 = scmp.ne.s32.totalorder %s27, %s28
    %p39 = scmp.eq.s32.totalorder %s19, 0
    %p40 = por %p38, %p39
    %p41 = scmp.ne.s32.totalorder %s27, %s28
    %p42 = scmp.eq.s32.totalorder %s20, 1
    %p43 = por %p41, %p42
    %p45 = scmp.ne.s32.totalorder %s28, %s44
    %p46 = scmp.eq.s32.totalorder %s20, 0
    %p47 = por %p45, %p46
    %s48 = ssub.s32 %s14, %s21
    %p49 = scmp.eq.s32.totalorder %s48, 0
    %s51 = sadd.s32 %s50, 1
    %s52 = scalar_select %p49, %s50, %s51
    %p55 = pneg %p49
    %p56 = scmp.eq.s32.totalorder %s14, 1
    %p57 = por %p55, %p56
    %p58 = scmp.ne.s32.totalorder %s50, %s53
    %p59 = scmp.eq.s32.totalorder %s14, 0
    %p60 = por %p58, %p59
    %p61 = scmp.ne.s32.totalorder %s50, %s53
    %p62 = scmp.eq.s32.totalorder %s19, 1
    %p63 = por %p61, %p62
    %p64 = scmp.ne.s32.totalorder %s53, %s54
    %p65 = scmp.eq.s32.totalorder %s19, 0
    %p66 = por %p64, %p65
    %p67 = scmp.ne.s32.totalorder %s53, %s54
    %p68 = scmp.eq.s32.totalorder %s20, 1
    %p69 = por %p67, %p68
    %p71 = scmp.ne.s32.totalorder %s54, %s70
    %p72 = scmp.eq.s32.totalorder %s20, 0
    %p73 = por %p71, %p72
    %s75 = sadd.s32 %s74, 1
    %p78 = scmp.eq.s32.totalorder %s14, 1
    %p79 = scmp.ne.s32.totalorder %s74, %s76
    %p80 = scmp.eq.s32.totalorder %s14, 0
    %p81 = por %p79, %p80
    %p82 = scmp.ne.s32.totalorder %s74, %s76
    %p83 = scmp.eq.s32.totalorder %s19, 1
    %p84 = por %p82, %p83
    %p85 = scmp.ne.s32.totalorder %s76, %s77
    %p86 = scmp.eq.s32.totalorder %s19, 0
    %p87 = por %p85, %p86
    %p88 = scmp.ne.s32.totalorder %s76, %s77
    %p89 = scmp.eq.s32.totalorder %s20, 1
    %p90 = por %p88, %p89
    %p92 = scmp.ne.s32.totalorder %s77, %s91
    %p93 = scmp.eq.s32.totalorder %s20, 0
    %p94 = por %p92, %p93
    %s96 = sadd.s32 %s95, 1
    %p99 = scmp.eq.s32.totalorder %s14, 1
    %p100 = scmp.ne.s32.totalorder %s95, %s97
    %p101 = scmp.eq.s32.totalorder %s14, 0
    %p102 = por %p100, %p101
    %p103 = scmp.ne.s32.totalorder %s95, %s97
    %p104 = scmp.eq.s32.totalorder %s19, 1
    %p105 = por %p103, %p104
    %p106 = scmp.ne.s32.totalorder %s97, %s98
    %p107 = scmp.eq.s32.totalorder %s19, 0
    %p108 = por %p106, %p107
    %p109 = scmp.ne.s32.totalorder %s97, %s98
    %p110 = scmp.eq.s32.totalorder %s20, 1
    %p111 = por %p109, %p110
    %p113 = scmp.ne.s32.totalorder %s98, %s112
    %p114 = scmp.eq.s32.totalorder %s20, 0
    %p115 = por %p113, %p114
    %s117 = sadd.s32 %s116, 1
    %p120 = scmp.eq.s32.totalorder %s14, 1
    %p121 = scmp.ne.s32.totalorder %s116, %s118
    %p122 = scmp.eq.s32.totalorder %s14, 0
    %p123 = por %p121, %p122
    %p124 = scmp.ne.s32.totalorder %s116, %s118
    %p125 = scmp.eq.s32.totalorder %s19, 1
    %p126 = por %p124, %p125
    %p127 = scmp.ne.s32.totalorder %s118, %s119
    %p128 = scmp.eq.s32.totalorder %s19, 0
    %p129 = por %p127, %p128
    %p130 = scmp.ne.s32.totalorder %s118, %s119
    %p131 = scmp.eq.s32.totalorder %s20, 1
    %p132 = por %p130, %p131
    %p134 = scmp.ne.s32.totalorder %s119, %s133
    %p135 = scmp.eq.s32.totalorder %s20, 0
    %p136 = por %p134, %p135
    %s138 = sadd.s32 %s137, 1
    %p141 = scmp.eq.s32.totalorder %s14, 1
    %p142 = scmp.ne.s32.totalorder %s137, %s139
    %p143 = scmp.eq.s32.totalorder %s14, 0
    %p144 = por %p142, %p143
    %p145 = scmp.ne.s32.totalorder %s137, %s139
    %p146 = scmp.eq.s32.totalorder %s19, 1
    %p147 = por %p145, %p146
    %p148 = scmp.ne.s32.totalorder %s139, %s140
    %p149 = scmp.eq.s32.totalorder %s19, 0
    %p150 = por %p148, %p149
    %p151 = scmp.ne.s32.totalorder %s139, %s140
    %p152 = scmp.eq.s32.totalorder %s20, 1
    %p153 = por %p151, %p152
    %p155 = scmp.ne.s32.totalorder %s140, %s154
    %p156 = scmp.eq.s32.totalorder %s20, 0
    %p157 = por %p155, %p156
    %s159 = sadd.s32 %s158, 1
    %p162 = scmp.eq.s32.totalorder %s14, 1
    %p163 = scmp.ne.s32.totalorder %s158, %s160
    %p164 = scmp.eq.s32.totalorder %s14, 0
    %p165 = por %p163, %p164
    %p166 = scmp.ne.s32.totalorder %s158, %s160
    %p167 = scmp.eq.s32.totalorder %s19, 1
    %p168 = por %p166, %p167
    %p169 = scmp.ne.s32.totalorder %s160, %s161
    %p170 = scmp.eq.s32.totalorder %s19, 0
    %p171 = por %p169, %p170
    %p172 = scmp.ne.s32.totalorder %s160, %s161
    %p173 = scmp.eq.s32.totalorder %s20, 1
    %p174 = por %p172, %p173
    %p176 = scmp.ne.s32.totalorder %s161, %s175
    %p177 = scmp.eq.s32.totalorder %s20, 0
    %p178 = por %p176, %p177
    %s180 = sadd.s32 %s179, 1
    %p183 = scmp.eq.s32.totalorder %s14, 1
    %p184 = scmp.ne.s32.totalorder %s179, %s181
    %p185 = scmp.eq.s32.totalorder %s14, 0
    %p186 = por %p184, %p185
    %p187 = scmp.ne.s32.totalorder %s179, %s181
    %p188 = scmp.eq.s32.totalorder %s19, 1
    %p189 = por %p187, %p188
    %p190 = scmp.ne.s32.totalorder %s181, %s182
    %p191 = scmp.eq.s32.totalorder %s19, 0
    %p192 = por %p190, %p191
    %p193 = scmp.ne.s32.totalorder %s181, %s182
    %p194 = scmp.eq.s32.totalorder %s20, 1
    %p195 = por %p193, %p194
    %p197 = scmp.ne.s32.totalorder %s182, %s196
    %p198 = scmp.eq.s32.totalorder %s20, 0
    %p199 = por %p197, %p198
    %s200 = ssub.s32 %s14, %s21
    %p201 = scmp.eq.s32.totalorder %s200, 0
    %s203 = sadd.s32 %s202, 1
    %s204 = scalar_select %p201, %s202, %s203
    %p207 = pneg %p201
    %p208 = scmp.eq.s32.totalorder %s14, 1
    %p209 = por %p207, %p208
    %p210 = scmp.ne.s32.totalorder %s202, %s205
    %p211 = scmp.eq.s32.totalorder %s14, 0
    %p212 = por %p210, %p211
    %p213 = scmp.ne.s32.totalorder %s202, %s205
    %p214 = scmp.eq.s32.totalorder %s19, 1
    %p215 = por %p213, %p214
    %p216 = scmp.ne.s32.totalorder %s205, %s206
    %p217 = scmp.eq.s32.totalorder %s19, 0
    %p218 = por %p216, %p217
    %p219 = scmp.ne.s32.totalorder %s205, %s206
    %p220 = scmp.eq.s32.totalorder %s20, 1
    %p221 = por %p219, %p220
    %p223 = scmp.ne.s32.totalorder %s206, %s222
    %p224 = scmp.eq.s32.totalorder %s20, 0
    %p225 = por %p223, %p224
    %p226 = scmp.le.s32.totalorder 1, %s14
    %p227 = scmp.lt.s32.totalorder %s14, 3
    %p228 = pnand %p226, %p227
    %p229 = pneg %p228
    // Predicated region
    $region9: #{text_identity_forward.1} parent=5 // pred_check
      _
    $region10: #{text_identity_forward.1} parent=5 // pred_check_branch
      %231 = sbr.rel (%p228) target = $region12
    $region11: #{text_identity_forward.1} parent=5 // pred_region
      %s232 = ssub.s32 %s14, 1
      // Predicated region
      $region13: #{text_identity_forward.1} parent=11 // pred_check
        %p233 = pneg %p87
      $region14: #{text_identity_forward.1} parent=11 // pred_check_branch
        %235 = sbr.rel (%p233) target = $region16
      $region15: #{text_identity_forward.1} parent=11 // pred_region
        _
      $region16: #{text_identity_forward.1} parent=11 // pred_fallthru
        _
      // Predicated region
      $region17: #{text_identity_forward.1} parent=11 // pred_check
        %p236 = pneg %p108
      $region18: #{text_identity_forward.1} parent=11 // pred_check_branch
        %238 = sbr.rel (%p236) target = $region20
      $region19: #{text_identity_forward.1} parent=11 // pred_region
        _
      $region20: #{text_identity_forward.1} parent=11 // pred_fallthru
        _
      // Predicated region
      $region21: #{text_identity_forward.1} parent=11 // pred_check
        %p239 = pneg %p129
      $region22: #{text_identity_forward.1} parent=11 // pred_check_branch
        %241 = sbr.rel (%p239) target = $region24
      $region23: #{text_identity_forward.1} parent=11 // pred_region
        _
      $region24: #{text_identity_forward.1} parent=11 // pred_fallthru
        _
      // Predicated region
      $region25: #{text_identity_forward.1} parent=11 // pred_check
        %p242 = pneg %p150
      $region26: #{text_identity_forward.1} parent=11 // pred_check_branch
        %244 = sbr.rel (%p242) target = $region28
      $region27: #{text_identity_forward.1} parent=11 // pred_region
        _
      $region28: #{text_identity_forward.1} parent=11 // pred_fallthru
        _
      // Predicated region
      $region29: #{text_identity_forward.1} parent=11 // pred_check
        %p245 = pneg %p171
      $region30: #{text_identity_forward.1} parent=11 // pred_check_branch
        %247 = sbr.rel (%p245) target = $region32
      $region31: #{text_identity_forward.1} parent=11 // pred_region
        _
      $region32: #{text_identity_forward.1} parent=11 // pred_fallthru
        _
      // Predicated region
      $region33: #{text_identity_forward.1} parent=11 // pred_check
        %p248 = pneg %p192
      $region34: #{text_identity_forward.1} parent=11 // pred_check_branch
        %250 = sbr.rel (%p248) target = $region36
      $region35: #{text_identity_forward.1} parent=11 // pred_region
        _
      $region36: #{text_identity_forward.1} parent=11 // pred_fallthru
        _
    $region12: #{text_identity_forward.1} parent=5 // pred_fallthru
      _
    %p251 = scmp.lt.s32.totalorder %s14, 2
    // Predicated region
    $region37: #{text_identity_forward.1} parent=5 // pred_check
      %p252 = pneg %p251
    $region38: #{text_identity_forward.1} parent=5 // pred_check_branch
      %254 = sbr.rel (%p252) target = $region40
    $region39: #{text_identity_forward.1} parent=5 // pred_region
      // Predicated region
      $region41: #{text_identity_forward.1} parent=39 // pred_check
        %p255 = pneg %p34
      $region42: #{text_identity_forward.1} parent=39 // pred_check_branch
        %257 = sbr.rel (%p255) target = $region44
      $region43: #{text_identity_forward.1} parent=39 // pred_region
        %p258 = scmp.lt.s32.totalorder %s14, 1
        %s259 = scalar_select %p258, %s14, 1
        %s260 = smul.addr %s259, 4
        %s261 = smul.addr %s260, 8
        %s262 = scalar_lea.vmem %s0, %s261
      $region44: #{text_identity_forward.1} parent=39 // pred_fallthru
        _
      // Predicated region
      $region45: #{text_identity_forward.1} parent=39 // pred_check
        %p263 = pneg %p60
      $region46: #{text_identity_forward.1} parent=39 // pred_check_branch
        %265 = sbr.rel (%p263) target = $region48
      $region47: #{text_identity_forward.1} parent=39 // pred_region
        %p266 = scmp.lt.s32.totalorder %s14, 1
        %s267 = scalar_select %p266, %s14, 1
        %s268 = scalar_lea.vmem %s1, %s267
      $region48: #{text_identity_forward.1} parent=39 // pred_fallthru
        _
    $region40: #{text_identity_forward.1} parent=5 // pred_fallthru
      _
    %p269 = scmp.le.s32.totalorder 1, %s14
    %p270 = scmp.lt.s32.totalorder %s14, 3
    %p271 = pnand %p269, %p270
    %p272 = pneg %p271
    // Predicated region
    $region49: #{text_identity_forward.1} parent=5 // pred_check
      _
    $region50: #{text_identity_forward.1} parent=5 // pred_check_branch
      %274 = sbr.rel (%p271) target = $region52
    $region51: #{text_identity_forward.1} parent=5 // pred_region
      %s275 = ssub.s32 %s14, 1
      %p276 = scmp.lt.s32.totalorder %s19, 1
      %s277 = scalar_select %p276, %s19, 1
      %s278 = smul.addr %s277, 4
      %s279 = smul.addr %s278, 8
      %s280 = scalar_lea.vmem %s0, %s279
      %p281 = pneg %p40
      %p282 = pneg %p37
      %p283 = scmp.lt.s32.totalorder %s19, 1
      %s284 = scalar_select %p283, %s19, 1
      %s285 = scalar_lea.vmem %s1, %s284
      %p286 = pneg %p66
      %p287 = pneg %p63
      %p288 = pneg %p87
      %p289 = pneg %p84
      %p290 = pneg %p108
      %p291 = pneg %p105
      %p292 = pneg %p129
      %p293 = pneg %p126
      %p294 = pneg %p150
      %p295 = pneg %p147
      %p296 = pneg %p171
      %p297 = pneg %p168
      %p298 = pneg %p192
      %p299 = pneg %p189
      %p300 = pneg %p218
      %p301 = pneg %p215
      %p302 = scmp.lt.s32.totalorder %s19, 1
      %s303 = scalar_select %p302, %s19, 1
      %s304 = smul.addr %s303, 4
      %s305 = smul.addr %s304, 8
      %s306 = scalar_lea.vmem %s8, %s305
      %p307 = scmp.lt.s32.totalorder %s19, 1
      %s308 = scalar_select %p307, %s19, 1
      %s309 = smul.addr %s308, 4
      %s310 = smul.addr %s309, 8
      %s311 = scalar_lea.vmem %s0, %s310
      %p312 = scmp.lt.s32.totalorder %s19, 1
      %s313 = scalar_select %p312, %s19, 1
      %s314 = scalar_lea.vmem %s1, %s313
      %p315 = scmp.lt.s32.totalorder %s19, 1
      %s316 = scalar_select %p315, %s19, 1
      %s317 = smul.addr %s316, 4
      %s318 = smul.addr %s317, 8
      %s319 = scalar_lea.vmem %s8, %s318
      %v320 = vld [vmem:[%s311] sm:$0xff]
      %v321 = vld [vmem:[%s311 + $0x8] sm:$0xff]
      %v322 = vld [vmem:[%s311 + $0x10] sm:$0xff]
      %v323 = vld [vmem:[%s311 + $0x18] sm:$0xff]
      %v324 = vld [vmem:[%s314] sm:$0x1]
      %v325 = vld [vmem:[%s2] sm:$0xff]
      %v326 = vld [vmem:[%s2 + $0x8] sm:$0xff]
      %v327 = vld [vmem:[%s2 + $0x10] sm:$0xff]
      %v328 = vld [vmem:[%s2 + $0x18] sm:$0xff]
      %v329 = vld [vmem:[%s3] sm:$0xff]
      %v330 = vld [vmem:[%s3 + $0x8] sm:$0xff]
      %v331 = vld [vmem:[%s3 + $0x10] sm:$0xff]
      %v332 = vld [vmem:[%s3 + $0x18] sm:$0xff]
      %vm333 = vcmask 261120
      %v335 = vsel %vm333, %v325, 0
      %v338 = vsel %vm333, %v326, 0
      %v341 = vsel %vm333, %v327, 0
      %v344 = vsel %vm333, %v328, 0
      %346 = vmatprep.subr.mxu0 0.0
      %347 = vmatpush1.msra.mxu0 0.0
      %348 = vmatprep.subr.mxu0 0.0
      %349 = vmatpush1.msra.mxu0 0.0
      %350 = vmatprep.subr.mxu0 0.0
      %351 = vmatpush1.msra.mxu0 0.0
      %352 = vmatprep.subr.mxu0 0.0
      %353 = vmatpush1.msra.mxu0 0.0
      %354 = vmatprep.subr.mxu0 0.0
      %355 = vmatpush1.msra.mxu0 0.0
      %356 = vmatprep.subr.mxu0 0.0
      %357 = vmatpush1.msra.mxu0 0.0
      %358 = vmatprep.subr.mxu0 0.0
      %359 = vmatpush1.msra.mxu0 0.0
      %360 = vmatprep.subr.mxu0 0.0
      %361 = vmatpush1.msra.mxu0 0.0
      %362 = vmatprep.subr.mxu0 0.0
      %363 = vmatpush1.msra.mxu0 0.0
      %364 = vmatprep.subr.mxu0 0.0
      %365 = vmatpush1.msra.mxu0 0.0
      %366 = vmatprep.subr.mxu0 0.0
      %367 = vmatpush1.msra.mxu0 0.0
      %368 = vmatprep.subr.mxu0 0.0
      %369 = vmatpush1.msra.mxu0 0.0
      %370 = vmatprep.subr.mxu0 0.0
      %371 = vmatpush1.msra.mxu0 %v323
      %372 = vmatprep.subr.mxu0 0.0
      %373 = vmatpush1.msra.mxu0 %v322
      %374 = vmatprep.subr.mxu0 0.0
      %375 = vmatpush1.msra.mxu0 %v321
      %376 = vmatprep.subr.mxu0 0.0
      %377 = vmatpush1.msra.mxu0 %v320
      %378 = vmatprep.subr.mxu0 0.0
      %379 = vmatpush2.msra.mxu0 0.0
      %380 = vmatprep.subr.mxu0 0.0
      %381 = vmatpush2.msra.mxu0 0.0
      %382 = vmatprep.subr.mxu0 0.0
      %383 = vmatpush2.msra.mxu0 0.0
      %384 = vmatprep.subr.mxu0 0.0
      %385 = vmatpush2.msra.mxu0 0.0
      %386 = vmatprep.subr.mxu0 0.0
      %387 = vmatpush2.msra.mxu0 0.0
      %388 = vmatprep.subr.mxu0 0.0
      %389 = vmatpush2.msra.mxu0 0.0
      %390 = vmatprep.subr.mxu0 0.0
      %391 = vmatpush2.msra.mxu0 0.0
      %392 = vmatprep.subr.mxu0 0.0
      %393 = vmatpush2.msra.mxu0 0.0
      %394 = vmatprep.subr.mxu0 0.0
      %395 = vmatpush2.msra.mxu0 0.0
      %396 = vmatprep.subr.mxu0 0.0
      %397 = vmatpush2.msra.mxu0 0.0
      %398 = vmatprep.subr.mxu0 0.0
      %399 = vmatpush2.msra.mxu0 0.0
      %400 = vmatprep.subr.mxu0 0.0
      %401 = vmatpush2.msra.mxu0 0.0
      %402 = vmatprep.subr.mxu0 0.0
      %403 = vmatpush2.msra.mxu0 0.0
      %404 = vmatprep.subr.mxu0 0.0
      %405 = vmatpush2.msra.mxu0 0.0
      %406 = vmatprep.subr.mxu0 0.0
      %407 = vmatpush2.msra.mxu0 0.0
      %408 = vmatprep.subr.mxu0 0.0
      %409 = vmatpush2.msra.mxu0 0.0
      %410 = vmatprep.mubr.f32.mxu0 0.0
      %411 = vmatmul.mubr.f32.gmra.mxu0 %v335
      %v412 = vpop.f32.mrf.mxu0
      %v413 = vadd.f32 %v329, %v412
      %v414 = vpop.f32.mrf.mxu0
      %415 = vmatprep.mubr.f32.mxu0 0.0
      %416 = vmatmul.mubr.f32.gmra.mxu0 %v338
      %v417 = vpop.f32.mrf.mxu0
      %v418 = vadd.f32 %v330, %v417
      %v419 = vpop.f32.mrf.mxu0
      %420 = vmatprep.mubr.f32.mxu0 0.0
      %421 = vmatmul.mubr.f32.gmra.mxu0 %v341
      %v422 = vpop.f32.mrf.mxu0
      %v423 = vadd.f32 %v331, %v422
      %v424 = vpop.f32.mrf.mxu0
      %425 = vmatprep.mubr.f32.mxu0 0.0
      %426 = vmatmul.mubr.f32.gmra.mxu0 %v344
      %v427 = vpop.f32.mrf.mxu0
      %v428 = vadd.f32 %v332, %v427
      %v429 = vpop.f32.mrf.mxu0
      %430 = vdwg.mxu0
      %v432 = vlaneseq
      %v433 = vshrl.u32 %v432, 7
      %v434 = vsub.s32 0, %v433
      %v435 = vrot.slane %v324, %v434
      %v437 = vmul.f32 %v413, %v435
      %v438 = vmul.f32 %v418, %v435
      %v439 = vmul.f32 %v423, %v435
      %v440 = vmul.f32 %v428, %v435
      %vm441 = vcmask 57344
      %v442 = vsel %vm441, %v324, 0.0
      %443 = vadd.xlane.f32.xlu0 %v442
      %v444 = vpop.xlane.xlu0 %443
      %v445 = vmax.f32 %v444, 1.0
      %vm446 = vcmask 64512
      %v447 = vsel %vm446, %v437, 0.0
      %448 = vadd.xlane.f32.xlu0 %v447
      %v449 = vpop.xlane.xlu0 %448
      %v450 = vsel %vm446, %v438, 0.0
      %451 = vadd.xlane.f32.xlu0 %v450
      %v452 = vpop.xlane.xlu0 %451
      %v453 = vsel %vm446, %v439, 0.0
      %454 = vadd.xlane.f32.xlu0 %v453
      %v455 = vpop.xlane.xlu0 %454
      %v456 = vsel %vm446, %v440, 0.0
      %457 = vadd.xlane.f32.xlu0 %v456
      %v458 = vpop.xlane.xlu0 %457
      %v459 = vlaneseq
      %v460 = vshrl.u32 %v459, 7
      %v461 = vsub.s32 0, %v460
      %v462 = vrot.slane %v445, %v461
      %v463 = vrcp.pop %v462
      %v464 = vmul.f32 %v449, %v463
      %v465 = vmul.f32 %v452, %v463
      %v466 = vmul.f32 %v455, %v463
      %v467 = vmul.f32 %v458, %v463
      %v468 = vld [vmem:[%s4] sm:$0xff]
      %v469 = vld [vmem:[%s4 + $0x8] sm:$0xff]
      %v470 = vld [vmem:[%s4 + $0x10] sm:$0xff]
      %v471 = vld [vmem:[%s4 + $0x18] sm:$0xff]
      %v472 = vld [vmem:[%s4 + $0x20] sm:$0xff]
      %v473 = vld [vmem:[%s4 + $0x28] sm:$0xff]
      %v474 = vld [vmem:[%s4 + $0x30] sm:$0xff]
      %v475 = vld [vmem:[%s4 + $0x38] sm:$0xff]
      %v476 = vld [vmem:[%s4 + $0x40] sm:$0xff]
      %v477 = vld [vmem:[%s4 + $0x48] sm:$0xff]
      %v478 = vld [vmem:[%s4 + $0x50] sm:$0xff]
      %v479 = vld [vmem:[%s4 + $0x58] sm:$0xff]
      %v480 = vld [vmem:[%s5] sm:$0xff]
      %v481 = vld [vmem:[%s5 + $0x8] sm:$0xff]
      %v482 = vld [vmem:[%s5 + $0x10] sm:$0xff]
      %v483 = vld [vmem:[%s5 + $0x18] sm:$0xff]
      %v484 = vld [vmem:[%s5 + $0x20] sm:$0xff]
      %v485 = vld [vmem:[%s5 + $0x28] sm:$0xff]
      %v486 = vld [vmem:[%s5 + $0x30] sm:$0xff]
      %v487 = vld [vmem:[%s5 + $0x38] sm:$0xff]
      %v488 = vld [vmem:[%s5 + $0x40] sm:$0xff]
      %v489 = vld [vmem:[%s5 + $0x48] sm:$0xff]
      %v490 = vld [vmem:[%s5 + $0x50] sm:$0xff]
      %v491 = vld [vmem:[%s5 + $0x58] sm:$0xff]
      %v493 = vsel %vm333, %v468, 0
      %v496 = vsel %vm333, %v469, 0
      %v499 = vsel %vm333, %v470, 0
      %v502 = vsel %vm333, %v471, 0
      %v505 = vsel %vm333, %v472, 0
      %v508 = vsel %vm333, %v473, 0
      %v511 = vsel %vm333, %v474, 0
      %v514 = vsel %vm333, %v475, 0
      %v517 = vsel %vm333, %v476, 0
      %v520 = vsel %vm333, %v477, 0
      %v523 = vsel %vm333, %v478, 0
      %v526 = vsel %vm333, %v479, 0
      %528 = vmatprep.subr.mxu0 0.0
      %529 = vmatpush1.msra.mxu0 0.0
      %530 = vmatprep.subr.mxu0 0.0
      %531 = vmatpush1.msra.mxu0 0.0
      %532 = vmatprep.subr.mxu0 0.0
      %533 = vmatpush1.msra.mxu0 0.0
      %534 = vmatprep.subr.mxu0 0.0
      %535 = vmatpush1.msra.mxu0 0.0
      %536 = vmatprep.subr.mxu0 0.0
      %537 = vmatpush1.msra.mxu0 0.0
      %538 = vmatprep.subr.mxu0 0.0
      %539 = vmatpush1.msra.mxu0 0.0
      %540 = vmatprep.subr.mxu0 0.0
      %541 = vmatpush1.msra.mxu0 0.0
      %542 = vmatprep.subr.mxu0 0.0
      %543 = vmatpush1.msra.mxu0 0.0
      %544 = vmatprep.subr.mxu0 0.0
      %545 = vmatpush1.msra.mxu0 0.0
      %546 = vmatprep.subr.mxu0 0.0
      %547 = vmatpush1.msra.mxu0 0.0
      %548 = vmatprep.subr.mxu0 0.0
      %549 = vmatpush1.msra.mxu0 0.0
      %550 = vmatprep.subr.mxu0 0.0
      %551 = vmatpush1.msra.mxu0 0.0
      %552 = vmatprep.subr.mxu0 0.0
      %553 = vmatpush1.msra.mxu0 %v467
      %554 = vmatprep.subr.mxu0 0.0
      %555 = vmatpush1.msra.mxu0 %v466
      %556 = vmatprep.subr.mxu0 0.0
      %557 = vmatpush1.msra.mxu0 %v465
      %558 = vmatprep.subr.mxu0 0.0
      %559 = vmatpush1.msra.mxu0 %v464
      %560 = vmatprep.subr.mxu0 0.0
      %561 = vmatpush2.msra.mxu0 0.0
      %562 = vmatprep.subr.mxu0 0.0
      %563 = vmatpush2.msra.mxu0 0.0
      %564 = vmatprep.subr.mxu0 0.0
      %565 = vmatpush2.msra.mxu0 0.0
      %566 = vmatprep.subr.mxu0 0.0
      %567 = vmatpush2.msra.mxu0 0.0
      %568 = vmatprep.subr.mxu0 0.0
      %569 = vmatpush2.msra.mxu0 0.0
      %570 = vmatprep.subr.mxu0 0.0
      %571 = vmatpush2.msra.mxu0 0.0
      %572 = vmatprep.subr.mxu0 0.0
      %573 = vmatpush2.msra.mxu0 0.0
      %574 = vmatprep.subr.mxu0 0.0
      %575 = vmatpush2.msra.mxu0 0.0
      %576 = vmatprep.subr.mxu0 0.0
      %577 = vmatpush2.msra.mxu0 0.0
      %578 = vmatprep.subr.mxu0 0.0
      %579 = vmatpush2.msra.mxu0 0.0
      %580 = vmatprep.subr.mxu0 0.0
      %581 = vmatpush2.msra.mxu0 0.0
      %582 = vmatprep.subr.mxu0 0.0
      %583 = vmatpush2.msra.mxu0 0.0
      %584 = vmatprep.subr.mxu0 0.0
      %585 = vmatpush2.msra.mxu0 0.0
      %586 = vmatprep.subr.mxu0 0.0
      %587 = vmatpush2.msra.mxu0 0.0
      %588 = vmatprep.subr.mxu0 0.0
      %589 = vmatpush2.msra.mxu0 0.0
      %590 = vmatprep.subr.mxu0 0.0
      %591 = vmatpush2.msra.mxu0 0.0
      %592 = vmatprep.mubr.f32.mxu0 0.0
      %593 = vmatmul.mubr.f32.gmra.mxu0 %v493
      %v594 = vpop.f32.mrf.mxu0
      %v595 = vadd.f32 %v480, %v594
      %v596 = vpop.f32.mrf.mxu0
      %597 = vmatprep.mubr.f32.mxu0 0.0
      %598 = vmatmul.mubr.f32.gmra.mxu0 %v496
      %v599 = vpop.f32.mrf.mxu0
      %v600 = vadd.f32 %v481, %v599
      %v601 = vpop.f32.mrf.mxu0
      %602 = vmatprep.mubr.f32.mxu0 0.0
      %603 = vmatmul.mubr.f32.gmra.mxu0 %v499
      %v604 = vpop.f32.mrf.mxu0
      %v605 = vadd.f32 %v482, %v604
      %v606 = vpop.f32.mrf.mxu0
      %607 = vmatprep.mubr.f32.mxu0 0.0
      %608 = vmatmul.mubr.f32.gmra.mxu0 %v502
      %v609 = vpop.f32.mrf.mxu0
      %v610 = vadd.f32 %v483, %v609
      %v611 = vpop.f32.mrf.mxu0
      %612 = vmatprep.mubr.f32.mxu0 0.0
      %613 = vmatmul.mubr.f32.gmra.mxu0 %v505
      %v614 = vpop.f32.mrf.mxu0
      %v615 = vadd.f32 %v484, %v614
      %v616 = vpop.f32.mrf.mxu0
      %617 = vmatprep.mubr.f32.mxu0 0.0
      %618 = vmatmul.mubr.f32.gmra.mxu0 %v508
      %v619 = vpop.f32.mrf.mxu0
      %v620 = vadd.f32 %v485, %v619
      %v621 = vpop.f32.mrf.mxu0
      %622 = vmatprep.mubr.f32.mxu0 0.0
      %623 = vmatmul.mubr.f32.gmra.mxu0 %v511
      %v624 = vpop.f32.mrf.mxu0
      %v625 = vadd.f32 %v486, %v624
      %v626 = vpop.f32.mrf.mxu0
      %627 = vmatprep.mubr.f32.mxu0 0.0
      %628 = vmatmul.mubr.f32.gmra.mxu0 %v514
      %v629 = vpop.f32.mrf.mxu0
      %v630 = vadd.f32 %v487, %v629
      %v631 = vpop.f32.mrf.mxu0
      %632 = vmatprep.mubr.f32.mxu0 0.0
      %633 = vmatmul.mubr.f32.gmra.mxu0 %v517
      %v634 = vpop.f32.mrf.mxu0
      %v635 = vadd.f32 %v488, %v634
      %v636 = vpop.f32.mrf.mxu0
      %637 = vmatprep.mubr.f32.mxu0 0.0
      %638 = vmatmul.mubr.f32.gmra.mxu0 %v520
      %v639 = vpop.f32.mrf.mxu0
      %v640 = vadd.f32 %v489, %v639
      %v641 = vpop.f32.mrf.mxu0
      %642 = vmatprep.mubr.f32.mxu0 0.0
      %643 = vmatmul.mubr.f32.gmra.mxu0 %v523
      %v644 = vpop.f32.mrf.mxu0
      %v645 = vadd.f32 %v490, %v644
      %v646 = vpop.f32.mrf.mxu0
      %647 = vmatprep.mubr.f32.mxu0 0.0
      %648 = vmatmul.mubr.f32.gmra.mxu0 %v526
      %v649 = vpop.f32.mrf.mxu0
      %v650 = vadd.f32 %v491, %v649
      %v651 = vpop.f32.mrf.mxu0
      %652 = vdwg.mxu0
      %654 = vset.pattern.permute.xlu0 0
      %655 = vperm.xlu0 %654, %v484
      %v656 = vpop.permute.xlu0 %655
      %659 = vset.pattern.permute.xlu0 0
      %660 = vperm.xlu0 %659, %v485
      %v661 = vpop.permute.xlu0 %660
      %664 = vset.pattern.permute.xlu0 0
      %665 = vperm.xlu0 %664, %v486
      %v666 = vpop.permute.xlu0 %665
      %669 = vset.pattern.permute.xlu0 0
      %670 = vperm.xlu0 %669, %v487
      %v671 = vpop.permute.xlu0 %670
      %674 = vset.pattern.permute.xlu0 0
      %675 = vperm.xlu0 %674, %v488
      %v676 = vpop.permute.xlu0 %675
      %679 = vset.pattern.permute.xlu0 0
      %680 = vperm.xlu0 %679, %v489
      %v681 = vpop.permute.xlu0 %680
      %684 = vset.pattern.permute.xlu0 0
      %685 = vperm.xlu0 %684, %v490
      %v686 = vpop.permute.xlu0 %685
      %689 = vset.pattern.permute.xlu0 0
      %690 = vperm.xlu0 %689, %v491
      %v691 = vpop.permute.xlu0 %690
      %693 = vmatprep.subr.mxu0 0.0
      %694 = vmatpush1.msra.mxu0 0.0
      %695 = vmatprep.subr.mxu0 0.0
      %696 = vmatpush1.msra.mxu0 0.0
      %697 = vmatprep.subr.mxu0 0.0
      %698 = vmatpush1.msra.mxu0 0.0
      %699 = vmatprep.subr.mxu0 0.0
      %700 = vmatpush1.msra.mxu0 0.0
      %701 = vmatprep.subr.mxu0 0.0
      %702 = vmatpush1.msra.mxu0 0.0
      %703 = vmatprep.subr.mxu0 0.0
      %704 = vmatpush1.msra.mxu0 0.0
      %705 = vmatprep.subr.mxu0 0.0
      %706 = vmatpush1.msra.mxu0 0.0
      %707 = vmatprep.subr.mxu0 0.0
      %708 = vmatpush1.msra.mxu0 0.0
      %709 = vmatprep.subr.mxu0 0.0
      %710 = vmatpush1.msra.mxu0 0.0
      %711 = vmatprep.subr.mxu0 0.0
      %712 = vmatpush1.msra.mxu0 0.0
      %713 = vmatprep.subr.mxu0 0.0
      %714 = vmatpush1.msra.mxu0 0.0
      %715 = vmatprep.subr.mxu0 0.0
      %716 = vmatpush1.msra.mxu0 0.0
      %717 = vmatprep.subr.mxu0 0.0
      %718 = vmatpush1.msra.mxu0 %v440
      %719 = vmatprep.subr.mxu0 0.0
      %720 = vmatpush1.msra.mxu0 %v439
      %721 = vmatprep.subr.mxu0 0.0
      %722 = vmatpush1.msra.mxu0 %v438
      %723 = vmatprep.subr.mxu0 0.0
      %724 = vmatpush1.msra.mxu0 %v437
      %725 = vmatprep.subr.mxu0 0.0
      %726 = vmatpush2.msra.mxu0 0.0
      %727 = vmatprep.subr.mxu0 0.0
      %728 = vmatpush2.msra.mxu0 0.0
      %729 = vmatprep.subr.mxu0 0.0
      %730 = vmatpush2.msra.mxu0 0.0
      %731 = vmatprep.subr.mxu0 0.0
      %732 = vmatpush2.msra.mxu0 0.0
      %733 = vmatprep.subr.mxu0 0.0
      %734 = vmatpush2.msra.mxu0 0.0
      %735 = vmatprep.subr.mxu0 0.0
      %736 = vmatpush2.msra.mxu0 0.0
      %737 = vmatprep.subr.mxu0 0.0
      %738 = vmatpush2.msra.mxu0 0.0
      %739 = vmatprep.subr.mxu0 0.0
      %740 = vmatpush2.msra.mxu0 0.0
      %741 = vmatprep.subr.mxu0 0.0
      %742 = vmatpush2.msra.mxu0 0.0
      %743 = vmatprep.subr.mxu0 0.0
      %744 = vmatpush2.msra.mxu0 0.0
      %745 = vmatprep.subr.mxu0 0.0
      %746 = vmatpush2.msra.mxu0 0.0
      %747 = vmatprep.subr.mxu0 0.0
      %748 = vmatpush2.msra.mxu0 0.0
      %749 = vmatprep.subr.mxu0 0.0
      %750 = vmatpush2.msra.mxu0 0.0
      %751 = vmatprep.subr.mxu0 0.0
      %752 = vmatpush2.msra.mxu0 0.0
      %753 = vmatprep.subr.mxu0 0.0
      %754 = vmatpush2.msra.mxu0 0.0
      %755 = vmatprep.subr.mxu0 0.0
      %756 = vmatpush2.msra.mxu0 0.0
      %757 = vmatprep.mubr.f32.mxu0 0.0
      %758 = vmatmul.mubr.f32.gmra.mxu0 %v505
      %v759 = vpop.f32.mrf.mxu0
      %v760 = vadd.f32 %v656, %v759
      %v761 = vpop.f32.mrf.mxu0
      %762 = vmatprep.mubr.f32.mxu0 0.0
      %763 = vmatmul.mubr.f32.gmra.mxu0 %v508
      %v764 = vpop.f32.mrf.mxu0
      %v765 = vadd.f32 %v661, %v764
      %v766 = vpop.f32.mrf.mxu0
      %767 = vmatprep.mubr.f32.mxu0 0.0
      %768 = vmatmul.mubr.f32.gmra.mxu0 %v511
      %v769 = vpop.f32.mrf.mxu0
      %v770 = vadd.f32 %v666, %v769
      %v771 = vpop.f32.mrf.mxu0
      %772 = vmatprep.mubr.f32.mxu0 0.0
      %773 = vmatmul.mubr.f32.gmra.mxu0 %v514
      %v774 = vpop.f32.mrf.mxu0
      %v775 = vadd.f32 %v671, %v774
      %v776 = vpop.f32.mrf.mxu0
      %777 = vmatprep.mubr.f32.mxu0 0.0
      %778 = vmatmul.mubr.f32.gmra.mxu0 %v517
      %v779 = vpop.f32.mrf.mxu0
      %v780 = vadd.f32 %v676, %v779
      %v781 = vpop.f32.mrf.mxu0
      %782 = vmatprep.mubr.f32.mxu0 0.0
      %783 = vmatmul.mubr.f32.gmra.mxu0 %v520
      %v784 = vpop.f32.mrf.mxu0
      %v785 = vadd.f32 %v681, %v784
      %v786 = vpop.f32.mrf.mxu0
      %787 = vmatprep.mubr.f32.mxu0 0.0
      %788 = vmatmul.mubr.f32.gmra.mxu0 %v523
      %v789 = vpop.f32.mrf.mxu0
      %v790 = vadd.f32 %v686, %v789
      %v791 = vpop.f32.mrf.mxu0
      %792 = vmatprep.mubr.f32.mxu0 0.0
      %793 = vmatmul.mubr.f32.gmra.mxu0 %v526
      %v794 = vpop.f32.mrf.mxu0
      %v795 = vadd.f32 %v691, %v794
      %v796 = vpop.f32.mrf.mxu0
      %797 = vdwg.mxu0
      %v798 = vmul.f32 %v595, %v615
      %v799 = vmul.f32 %v600, %v620
      %v800 = vmul.f32 %v605, %v625
      %v801 = vmul.f32 %v610, %v630
      %vm802 = vcmask 7168
      %v803 = vsel %vm802, %v798, 0.0
      %v804 = vrot.slane %v803, 4
      %v805 = vadd.f32 %v803, %v804
      %v806 = vrot.slane %v805, 2
      %v807 = vadd.f32 %v805, %v806
      %v808 = vrot.slane %v807, 1
      %v809 = vadd.f32 %v807, %v808
      %v810 = vsel %vm802, %v799, 0.0
      %v811 = vrot.slane %v810, 4
      %v812 = vadd.f32 %v810, %v811
      %v813 = vrot.slane %v812, 2
      %v814 = vadd.f32 %v812, %v813
      %v815 = vrot.slane %v814, 1
      %v816 = vadd.f32 %v814, %v815
      %v817 = vsel %vm802, %v800, 0.0
      %v818 = vrot.slane %v817, 4
      %v819 = vadd.f32 %v817, %v818
      %v820 = vrot.slane %v819, 2
      %v821 = vadd.f32 %v819, %v820
      %v822 = vrot.slane %v821, 1
      %v823 = vadd.f32 %v821, %v822
      %v824 = vsel %vm802, %v801, 0.0
      %v825 = vrot.slane %v824, 4
      %v826 = vadd.f32 %v824, %v825
      %v827 = vrot.slane %v826, 2
      %v828 = vadd.f32 %v826, %v827
      %v829 = vrot.slane %v828, 1
      %v830 = vadd.f32 %v828, %v829
      %v831 = vmul.f32 %v809, 0.35355338
      %v832 = vmul.f32 %v816, 0.35355338
      %v833 = vmul.f32 %v823, 0.35355338
      %v834 = vmul.f32 %v830, 0.35355338
      %836 = vset.pattern.permute.xlu0 0
      %837 = vperm.xlu0 %836, %v595
      %v838 = vpop.permute.xlu0 %837
      %841 = vset.pattern.permute.xlu0 0
      %842 = vperm.xlu0 %841, %v600
      %v843 = vpop.permute.xlu0 %842
      %846 = vset.pattern.permute.xlu0 0
      %847 = vperm.xlu0 %846, %v605
      %v848 = vpop.permute.xlu0 %847
      %851 = vset.pattern.permute.xlu0 0
      %852 = vperm.xlu0 %851, %v610
      %v853 = vpop.permute.xlu0 %852
      %v855 = vmul.f32 %v838, %v760
      %v856 = vmul.f32 %v843, %v765
      %v857 = vmul.f32 %v848, %v770
      %v858 = vmul.f32 %v853, %v775
      %v859 = vsel %vm446, %v855, 0.0
      %v860 = vrot.slane %v859, 4
      %v861 = vadd.f32 %v859, %v860
      %v862 = vrot.slane %v861, 2
      %v863 = vadd.f32 %v861, %v862
      %v864 = vrot.slane %v863, 1
      %v865 = vadd.f32 %v863, %v864
      %v866 = vsel %vm446, %v856, 0.0
      %v867 = vrot.slane %v866, 4
      %v868 = vadd.f32 %v866, %v867
      %v869 = vrot.slane %v868, 2
      %v870 = vadd.f32 %v868, %v869
      %v871 = vrot.slane %v870, 1
      %v872 = vadd.f32 %v870, %v871
      %v873 = vsel %vm446, %v857, 0.0
      %v874 = vrot.slane %v873, 4
      %v875 = vadd.f32 %v873, %v874
      %v876 = vrot.slane %v875, 2
      %v877 = vadd.f32 %v875, %v876
      %v878 = vrot.slane %v877, 1
      %v879 = vadd.f32 %v877, %v878
      %v880 = vsel %vm446, %v858, 0.0
      %v881 = vrot.slane %v880, 4
      %v882 = vadd.f32 %v880, %v881
      %v883 = vrot.slane %v882, 2
      %v884 = vadd.f32 %v882, %v883
      %v885 = vrot.slane %v884, 1
      %v886 = vadd.f32 %v884, %v885
      %v887 = vmul.f32 %v865, 0.35355338
      %v888 = vmul.f32 %v872, 0.35355338
      %v889 = vmul.f32 %v879, 0.35355338
      %v890 = vmul.f32 %v886, 0.35355338
      %vm891 = vcmp.gt.f32.partialorder %v324, 0.0
      %v892 = vsel %vm891, 1, 0
      %vm893 = vcmp.eq.s32.totalorder %v892, 1
      %v894 = vsel %vm893, %v887, -1e+30
      %v895 = vsel %vm893, %v888, -1e+30
      %v896 = vsel %vm893, %v889, -1e+30
      %v897 = vsel %vm893, %v890, -1e+30
      %v898 = vsel %vm441, %v894, -inf
      %899 = vmax.xlane.f32.xlu0 %v898
      %v900 = vpop.xlane.xlu0 %899
      %v901 = vsel %vm441, %v895, -inf
      %902 = vmax.xlane.f32.xlu0 %v901
      %v903 = vpop.xlane.xlu0 %902
      %v904 = vsel %vm441, %v896, -inf
      %905 = vmax.xlane.f32.xlu0 %v904
      %v906 = vpop.xlane.xlu0 %905
      %v907 = vsel %vm441, %v897, -inf
      %908 = vmax.xlane.f32.xlu0 %v907
      %v909 = vpop.xlane.xlu0 %908
      %v910 = vmax.f32 %v831, %v900
      %v911 = vmax.f32 %v832, %v903
      %v912 = vmax.f32 %v833, %v906
      %v913 = vmax.f32 %v834, %v909
      %v914 = vsub.f32 %v831, %v910
      %v915 = vsub.f32 %v832, %v911
      %v916 = vsub.f32 %v833, %v912
      %v917 = vsub.f32 %v834, %v913
      %v918 = vmul.f32 %v914, 1.442695
      %v919 = vpow.pop %v918
      %v920 = vmul.f32 %v915, 1.442695
      %v921 = vpow.pop %v920
      %v922 = vmul.f32 %v916, 1.442695
      %v923 = vpow.pop %v922
      %v924 = vmul.f32 %v917, 1.442695
      %v925 = vpow.pop %v924
      %927 = vset.pattern.permute.xlu0 0
      %928 = vperm.xlu0 %927, %v910
      %v929 = vpop.permute.xlu0 %928
      %932 = vset.pattern.permute.xlu0 0
      %933 = vperm.xlu0 %932, %v911
      %v934 = vpop.permute.xlu0 %933
      %937 = vset.pattern.permute.xlu0 0
      %938 = vperm.xlu0 %937, %v912
      %v939 = vpop.permute.xlu0 %938
      %942 = vset.pattern.permute.xlu0 0
      %943 = vperm.xlu0 %942, %v913
      %v944 = vpop.permute.xlu0 %943
      %v946 = vsub.f32 %v894, %v929
      %v947 = vsub.f32 %v895, %v934
      %v948 = vsub.f32 %v896, %v939
      %v949 = vsub.f32 %v897, %v944
      %v950 = vmul.f32 %v946, 1.442695
      %v951 = vpow.pop %v950
      %v952 = vmul.f32 %v947, 1.442695
      %v953 = vpow.pop %v952
      %v954 = vmul.f32 %v948, 1.442695
      %v955 = vpow.pop %v954
      %v956 = vmul.f32 %v949, 1.442695
      %v957 = vpow.pop %v956
      %v958 = vsel %vm441, %v951, 0.0
      %959 = vadd.xlane.f32.xlu0 %v958
      %v960 = vpop.xlane.xlu0 %959
      %v961 = vsel %vm441, %v953, 0.0
      %962 = vadd.xlane.f32.xlu0 %v961
      %v963 = vpop.xlane.xlu0 %962
      %v964 = vsel %vm441, %v955, 0.0
      %965 = vadd.xlane.f32.xlu0 %v964
      %v966 = vpop.xlane.xlu0 %965
      %v967 = vsel %vm441, %v957, 0.0
      %968 = vadd.xlane.f32.xlu0 %v967
      %v969 = vpop.xlane.xlu0 %968
      %v970 = vadd.f32 %v919, %v960
      %v971 = vadd.f32 %v921, %v963
      %v972 = vadd.f32 %v923, %v966
      %v973 = vadd.f32 %v925, %v969
      %v974 = vrcp.pop %v970
      %v975 = vrcp.pop %v971
      %v976 = vrcp.pop %v972
      %v977 = vrcp.pop %v973
      %v978 = vmul.f32 %v970, %v974
      %v979 = vmul.f32 %v971, %v975
      %v980 = vmul.f32 %v972, %v976
      %v981 = vmul.f32 %v973, %v977
      %v982 = vsub.f32 2.0, %v978
      %v983 = vsub.f32 2.0, %v979
      %v984 = vsub.f32 2.0, %v980
      %v985 = vsub.f32 2.0, %v981
      %v986 = vmul.f32 %v974, %v982
      %v987 = vmul.f32 %v975, %v983
      %v988 = vmul.f32 %v976, %v984
      %v989 = vmul.f32 %v977, %v985
      %v990 = vlaneseq
      %v991 = vshrl.u32 %v990, 7
      %v992 = vsub.s32 0, %v991
      %v993 = vrot.slane %v919, %v992
      %v994 = vlaneseq
      %v995 = vshrl.u32 %v994, 7
      %v996 = vsub.s32 0, %v995
      %v997 = vrot.slane %v921, %v996
      %v998 = vlaneseq
      %v999 = vshrl.u32 %v998, 7
      %v1000 = vsub.s32 0, %v999
      %v1001 = vrot.slane %v923, %v1000
      %v1002 = vlaneseq
      %v1003 = vshrl.u32 %v1002, 7
      %v1004 = vsub.s32 0, %v1003
      %v1005 = vrot.slane %v925, %v1004
      %v1006 = vmul.f32 %v635, %v993
      %v1007 = vmul.f32 %v640, %v997
      %v1008 = vmul.f32 %v645, %v1001
      %v1009 = vmul.f32 %v650, %v1005
      %v1014 = vlaneseq
      %v1015 = vshrl.u32 %v1014, 7
      %v1016 = vsub.s32 0, %v1015
      %v1017 = vrot.slane %v951, %v1016
      %v1018 = vlaneseq
      %v1019 = vshrl.u32 %v1018, 7
      %v1020 = vsub.s32 0, %v1019
      %v1021 = vrot.slane %v953, %v1020
      %v1022 = vlaneseq
      %v1023 = vshrl.u32 %v1022, 7
      %v1024 = vsub.s32 0, %v1023
      %v1025 = vrot.slane %v955, %v1024
      %v1026 = vlaneseq
      %v1027 = vshrl.u32 %v1026, 7
      %v1028 = vsub.s32 0, %v1027
      %v1029 = vrot.slane %v957, %v1028
      %v1034 = vmul.f32 %v780, %v1017
      %v1035 = vmul.f32 %v785, %v1021
      %v1036 = vmul.f32 %v790, %v1025
      %v1037 = vmul.f32 %v795, %v1029
      %v1038 = vsel %vm446, %v1034, 0.0
      %1039 = vadd.xlane.f32.xlu0 %v1038
      %v1040 = vpop.xlane.xlu0 %1039
      %v1041 = vsel %vm446, %v1035, 0.0
      %1042 = vadd.xlane.f32.xlu0 %v1041
      %v1043 = vpop.xlane.xlu0 %1042
      %v1044 = vsel %vm446, %v1036, 0.0
      %1045 = vadd.xlane.f32.xlu0 %v1044
      %v1046 = vpop.xlane.xlu0 %1045
      %v1047 = vsel %vm446, %v1037, 0.0
      %1048 = vadd.xlane.f32.xlu0 %v1047
      %v1049 = vpop.xlane.xlu0 %1048
      %v1050 = vadd.f32 %v1006, %v1040
      %v1051 = vadd.f32 %v1007, %v1043
      %v1052 = vadd.f32 %v1008, %v1046
      %v1053 = vadd.f32 %v1009, %v1049
      %v1054 = vlaneseq
      %v1055 = vshrl.u32 %v1054, 7
      %v1056 = vsub.s32 0, %v1055
      %v1057 = vrot.slane %v986, %v1056
      %v1058 = vlaneseq
      %v1059 = vshrl.u32 %v1058, 7
      %v1060 = vsub.s32 0, %v1059
      %v1061 = vrot.slane %v987, %v1060
      %v1062 = vlaneseq
      %v1063 = vshrl.u32 %v1062, 7
      %v1064 = vsub.s32 0, %v1063
      %v1065 = vrot.slane %v988, %v1064
      %v1066 = vlaneseq
      %v1067 = vshrl.u32 %v1066, 7
      %v1068 = vsub.s32 0, %v1067
      %v1069 = vrot.slane %v989, %v1068
      %v1070 = vmul.f32 %v1050, %v1057
      %v1071 = vmul.f32 %v1051, %v1061
      %v1072 = vmul.f32 %v1052, %v1065
      %v1073 = vmul.f32 %v1053, %v1069
      %v1074 = vld [vmem:[%s6] sm:$0xff]
      %v1075 = vld [vmem:[%s6 + $0x8] sm:$0xff]
      %v1076 = vld [vmem:[%s6 + $0x10] sm:$0xff]
      %v1077 = vld [vmem:[%s6 + $0x18] sm:$0xff]
      %v1078 = vld [vmem:[%s7] sm:$0xff]
      %v1079 = vld [vmem:[%s7 + $0x8] sm:$0xff]
      %v1080 = vld [vmem:[%s7 + $0x10] sm:$0xff]
      %v1081 = vld [vmem:[%s7 + $0x18] sm:$0xff]
      %v1083 = vsel %vm333, %v1074, 0
      %v1086 = vsel %vm333, %v1075, 0
      %v1089 = vsel %vm333, %v1076, 0
      %v1092 = vsel %vm333, %v1077, 0
      %1094 = vmatprep.subr.mxu0 0.0
      %1095 = vmatpush1.msra.mxu0 0.0
      %1096 = vmatprep.subr.mxu0 0.0
      %1097 = vmatpush1.msra.mxu0 0.0
      %1098 = vmatprep.subr.mxu0 0.0
      %1099 = vmatpush1.msra.mxu0 0.0
      %1100 = vmatprep.subr.mxu0 0.0
      %1101 = vmatpush1.msra.mxu0 0.0
      %1102 = vmatprep.subr.mxu0 0.0
      %1103 = vmatpush1.msra.mxu0 0.0
      %1104 = vmatprep.subr.mxu0 0.0
      %1105 = vmatpush1.msra.mxu0 0.0
      %1106 = vmatprep.subr.mxu0 0.0
      %1107 = vmatpush1.msra.mxu0 0.0
      %1108 = vmatprep.subr.mxu0 0.0
      %1109 = vmatpush1.msra.mxu0 0.0
      %1110 = vmatprep.subr.mxu0 0.0
      %1111 = vmatpush1.msra.mxu0 0.0
      %1112 = vmatprep.subr.mxu0 0.0
      %1113 = vmatpush1.msra.mxu0 0.0
      %1114 = vmatprep.subr.mxu0 0.0
      %1115 = vmatpush1.msra.mxu0 0.0
      %1116 = vmatprep.subr.mxu0 0.0
      %1117 = vmatpush1.msra.mxu0 0.0
      %1118 = vmatprep.subr.mxu0 0.0
      %1119 = vmatpush1.msra.mxu0 %v1073
      %1120 = vmatprep.subr.mxu0 0.0
      %1121 = vmatpush1.msra.mxu0 %v1072
      %1122 = vmatprep.subr.mxu0 0.0
      %1123 = vmatpush1.msra.mxu0 %v1071
      %1124 = vmatprep.subr.mxu0 0.0
      %1125 = vmatpush1.msra.mxu0 %v1070
      %1126 = vmatprep.subr.mxu0 0.0
      %1127 = vmatpush2.msra.mxu0 0.0
      %1128 = vmatprep.subr.mxu0 0.0
      %1129 = vmatpush2.msra.mxu0 0.0
      %1130 = vmatprep.subr.mxu0 0.0
      %1131 = vmatpush2.msra.mxu0 0.0
      %1132 = vmatprep.subr.mxu0 0.0
      %1133 = vmatpush2.msra.mxu0 0.0
      %1134 = vmatprep.subr.mxu0 0.0
      %1135 = vmatpush2.msra.mxu0 0.0
      %1136 = vmatprep.subr.mxu0 0.0
      %1137 = vmatpush2.msra.mxu0 0.0
      %1138 = vmatprep.subr.mxu0 0.0
      %1139 = vmatpush2.msra.mxu0 0.0
      %1140 = vmatprep.subr.mxu0 0.0
      %1141 = vmatpush2.msra.mxu0 0.0
      %1142 = vmatprep.subr.mxu0 0.0
      %1143 = vmatpush2.msra.mxu0 0.0
      %1144 = vmatprep.subr.mxu0 0.0
      %1145 = vmatpush2.msra.mxu0 0.0
      %1146 = vmatprep.subr.mxu0 0.0
      %1147 = vmatpush2.msra.mxu0 0.0
      %1148 = vmatprep.subr.mxu0 0.0
      %1149 = vmatpush2.msra.mxu0 0.0
      %1150 = vmatprep.subr.mxu0 0.0
      %1151 = vmatpush2.msra.mxu0 0.0
      %1152 = vmatprep.subr.mxu0 0.0
      %1153 = vmatpush2.msra.mxu0 0.0
      %1154 = vmatprep.subr.mxu0 0.0
      %1155 = vmatpush2.msra.mxu0 0.0
      %1156 = vmatprep.subr.mxu0 0.0
      %1157 = vmatpush2.msra.mxu0 0.0
      %1158 = vmatprep.mubr.f32.mxu0 0.0
      %1159 = vmatmul.mubr.f32.gmra.mxu0 %v1083
      %v1160 = vpop.f32.mrf.mxu0
      %v1161 = vadd.f32 %v1078, %v1160
      %v1162 = vpop.f32.mrf.mxu0
      %1163 = vmatprep.mubr.f32.mxu0 0.0
      %1164 = vmatmul.mubr.f32.gmra.mxu0 %v1086
      %v1165 = vpop.f32.mrf.mxu0
      %v1166 = vadd.f32 %v1079, %v1165
      %v1167 = vpop.f32.mrf.mxu0
      %1168 = vmatprep.mubr.f32.mxu0 0.0
      %1169 = vmatmul.mubr.f32.gmra.mxu0 %v1089
      %v1170 = vpop.f32.mrf.mxu0
      %v1171 = vadd.f32 %v1080, %v1170
      %v1172 = vpop.f32.mrf.mxu0
      %1173 = vmatprep.mubr.f32.mxu0 0.0
      %1174 = vmatmul.mubr.f32.gmra.mxu0 %v1092
      %v1175 = vpop.f32.mrf.mxu0
      %v1176 = vadd.f32 %v1081, %v1175
      %v1177 = vpop.f32.mrf.mxu0
      %1178 = vdwg.mxu0
      %1179 = vst.msk [vmem:[%s319] sm:$0xff] %vm802, %v1161
      %1180 = vst.msk [vmem:[%s319 + $0x8] sm:$0xff] %vm802, %v1166
      %1181 = vst.msk [vmem:[%s319 + $0x10] sm:$0xff] %vm802, %v1171
      %1182 = vst.msk [vmem:[%s319 + $0x18] sm:$0xff] %vm802, %v1176
      %1187 = vrot.lane.b32.xlu0 %v437, 1
      %v1188 = vpop.permute.xlu0 %1187
      %1189 = vrot.lane.b32.xlu0 %v438, 1
      %v1190 = vpop.permute.xlu0 %1189
      %1191 = vrot.lane.b32.xlu0 %v439, 1
      %v1192 = vpop.permute.xlu0 %1191
      %1193 = vrot.lane.b32.xlu0 %v440, 1
      %v1194 = vpop.permute.xlu0 %1193
      %vm1199 = vcmask 72712
      %1200 = vst.msk [vmem:[%s319] sm:$0xff] %vm1199, %v1188
      %1201 = vst.msk [vmem:[%s319 + $0x8] sm:$0xff] %vm1199, %v1190
      %1202 = vst.msk [vmem:[%s319 + $0x10] sm:$0xff] %vm1199, %v1192
      %1203 = vst.msk [vmem:[%s319 + $0x18] sm:$0xff] %vm1199, %v1194
      %p1204 = scmp.lt.s32.totalorder %s19, 1
      %s1205 = scalar_select %p1204, %s19, 1
      %s1206 = smul.addr %s1205, 4
      %s1207 = smul.addr %s1206, 8
      %s1208 = scalar_lea.vmem %s8, %s1207
      // Predicated region
      $region53: #{text_identity_forward.1} parent=51 // pred_check
        %p1209 = pneg %p215
      $region54: #{text_identity_forward.1} parent=51 // pred_check_branch
        %1211 = sbr.rel (%p1209) target = $region56
      $region55: #{text_identity_forward.1} parent=51 // pred_region
        _
      $region56: #{text_identity_forward.1} parent=51 // pred_fallthru
        _
    $region52: #{text_identity_forward.1} parent=5 // pred_fallthru
      _
    %p1212 = scmp.le.s32.totalorder 2, %s14
    // Predicated region
    $region57: #{text_identity_forward.1} parent=5 // pred_check
      %p1213 = pneg %p1212
    $region58: #{text_identity_forward.1} parent=5 // pred_check_branch
      %1215 = sbr.rel (%p1213) target = $region60
    $region59: #{text_identity_forward.1} parent=5 // pred_region
      %s1216 = ssub.s32 %s14, 2
      // Predicated region
      $region61: #{text_identity_forward.1} parent=59 // pred_check
        %p1217 = pneg %p221
      $region62: #{text_identity_forward.1} parent=59 // pred_check_branch
        %1219 = sbr.rel (%p1217) target = $region64
      $region63: #{text_identity_forward.1} parent=59 // pred_region
        %p1220 = scmp.lt.s32.totalorder %s20, 1
        %s1221 = scalar_select %p1220, %s20, 1
        %s1222 = smul.addr %s1221, 4
        %s1223 = smul.addr %s1222, 8
        %s1224 = scalar_lea.vmem %s8, %s1223
      $region64: #{text_identity_forward.1} parent=59 // pred_fallthru
        _
    $region60: #{text_identity_forward.1} parent=5 // pred_fallthru
      _
  $region6: #{text_identity_forward.1} parent=0 // loop_footer
    %s18 = sadd.s32 1, %s14
  $region7: #{text_identity_forward.1} parent=0 // loop_footer_branch
    %13 = sbr.rel target = $region3
  $region8: #{text_identity_forward.1} parent=0 // loop_exit
    _

</llo_original>
